<compile_context>
chip_gen: v5e
topology: v5e:2x2
jax: 0.10.0
libtpu: 0.0.40
codegen_flags: <defaults>
</compile_context>

<pallas_src>
import functools

import jax
import jax.numpy as jnp
from jax import lax
from jax.experimental import pallas as pl
from jax.experimental.pallas import tpu as pltpu

LARGE_NUMBER = 10000000000.0


def _attention_kernel(*refs, head, head_dim, has_kpad, has_mask, with_score,
                      compute_dtype, approx_recip):
    """Grid = (batch, key-row tile).  Both axes are independent ("parallel").

    Refs (in order):
      q_ref     : (N, H)        head-contiguous Q for this batch element (resident over t)
      k_ref     : (TN, H)       head-contiguous K row tile
      v_ref     : (N, H)        head-contiguous V for this batch element (resident over t)
      wo_ref    : (H, H)        row-permuted Wo (compute dtype, single-buffered)
      bo_ref    : (1, H)        f32 (single-buffered)
      [kpad_ref]: (1, N)        f32 key-padding mask (1.0 where padded)
      [mask_ref]: (TN, N)       f32 additive attention mask (broadcast over heads)
      out_ref   : (TN, H)
      [score_ref]: (head, TN, N) masked pre-softmax score (torch return value), score dtype
    """
    it = iter(refs)
    q_ref = next(it)
    k_ref = next(it)
    v_ref = next(it)
    wo_ref = next(it)
    bo_ref = next(it)
    kpad_ref = next(it) if has_kpad else None
    mask_ref = next(it) if has_mask else None
    out_ref = next(it)
    score_ref = next(it) if with_score else None

    tn = k_ref.shape[0]
    n = q_ref.shape[0]
    scale = 1.0 / (float(head_dim) ** 0.5)

    # Hoisted once (JAX does not CSE broadcast_in_dim inside the static head loop).
    if has_kpad:
        kbias = jnp.broadcast_to(kpad_ref[...] * LARGE_NUMBER, (tn, n))       # (TN, N)
    if has_mask:
        mbias = mask_ref[...].astype(jnp.float32)                             # (TN, N)

    o_parts = []
    for h in range(head):
        hs = h * head_dim
        q_h = q_ref[:, hs:hs + head_dim]                                      # (N, hd)
        k_h = k_ref[:, hs:hs + head_dim]                                      # (TN, hd)
        v_h = v_ref[:, hs:hs + head_dim]                                      # (N, hd)

        # score[n, m] = sum_f k[n, f] * q[m, f]  -- contract over head_dim, no transpose.
        s = lax.dot_general(k_h, q_h, (((1,), (1,)), ((), ())),
                            preferred_element_type=jnp.float32) * scale       # (TN, N) f32
        if has_mask:
            s = s + mbias
        if has_kpad:
            s = s - kbias
        if with_score:
            score_ref[h, :, :] = s.astype(score_ref.dtype)                    # torch's score

        # Softmax over the m (last / lane) axis from the f32 score, numerically stable.
        p = jnp.exp(s - jnp.max(s, axis=-1, keepdims=True))
        denom = jnp.sum(p, axis=-1, keepdims=True)
        if approx_recip:
            p = p * pl.reciprocal(denom, approx=True)    # EUP divide on the bf16 fast path
        else:
            p = p / denom                                # exact divide on the f32 path
        # TODO(synk): attention dropout only for eval mode (identity).

        o_parts.append(jnp.dot(p.astype(compute_dtype), v_h,
                               preferred_element_type=jnp.float32))           # (TN, hd) f32

    o = o_parts[0] if head == 1 else jnp.concatenate(o_parts, axis=-1)        # (TN, H) f32

    # Single fused output projection: one (TN,H)@(H,H) matmul + bias.
    out_ref[...] = (jnp.dot(o.astype(compute_dtype), wo_ref[...],
                            preferred_element_type=jnp.float32)
                    + bo_ref[...]).astype(out_ref.dtype)


def _vmem_capacity_bytes():
    """Generation-aware VMEM capacity (128 MiB v5e/v6e, 64 MiB per-TC v7x), with fallback."""
    try:
        return int(pltpu.get_tpu_info().vmem_capacity_bytes)
    except Exception:
        return 64 * 1024 * 1024   # conservative (v7x-sized) fallback


def _pick_n_tile(n, hidden, head, dsz, score_dsz, has_mask, has_kpad, with_score, budget):
    """Pick the key-row tile TN: the largest divisor of N (multiple of 8, <= 512) whose
    double-buffered VMEM ledger fits the budget, with a floor of 128 (MXU M-dim)."""
    if n <= 128 or n % 8 != 0:
        return n

    fixed = 2 * 2 * n * hidden * dsz                 # Q + V blocks, double-buffered
    fixed += hidden * hidden * dsz + hidden * 4      # Wo (single-buffered) + bo
    if has_kpad:
        fixed += 2 * n * 4

    def ledger(tn):
        per = 2 * tn * hidden * dsz                  # K tile
        per += 2 * tn * hidden * dsz                 # out tile
        if with_score:
            per += 2 * head * tn * n * score_dsz     # score block (dominant term)
        if has_mask:
            per += 2 * tn * n * 4
        return fixed + per

    cands = [t for t in range(8, min(n, 512) + 1, 8) if n % t == 0]
    if not cands:
        return n
    fitting = [t for t in cands if ledger(t) <= budget]
    tn = max(fitting) if fitting else min(cands)
    ge128 = [t for t in cands if t >= 128]
    if tn < 128 and ge128:
        tn = min(ge128)   # MXU utilization / grid-overhead win beats VMEM frugality
    return tn


def attention_layer(x, params, head, key_pad=None, attn_mask=None,
                    with_score=True, score_head_major=False, score_dtype=None,
                    n_tile=None):
    """Pallas implementation of AttentionLayer.forward (eval mode).

    Returns (out, attention_score). attention_score is (B, N, N, head) like PyTorch unless
    score_head_major=True (kernel-native lane-dense (B, head, N, N)), or None when
    with_score=False. Weights are stored (in, out) = transpose of torch's (out, in).
    """
    B, N, F = x.shape
    hidden = params["wq"].shape[1]
    head_dim = hidden // head
    assert head_dim * head == hidden
    compute_dtype = x.dtype
    score_dtype = jnp.dtype(score_dtype) if score_dtype is not None else jnp.dtype(compute_dtype)

    # --- plain-JAX glue: permute weight columns so head h occupies contiguous columns
    #     [h*head_dim, (h+1)*head_dim).  Torch packing (reshape hidden -> (hd, head)) puts
    #     head h at columns {h, h+head, ...}: new col h*hd+f  <-  old col f*head+h.
    perm = (jnp.arange(head_dim)[None, :] * head + jnp.arange(head)[:, None]).reshape(-1)
    wq_p = params["wq"][:, perm].astype(compute_dtype)
    wk_p = params["wk"][:, perm].astype(compute_dtype)
    wv_p = params["wv"][:, perm].astype(compute_dtype)
    bq_p = params["bq"][perm].astype(jnp.float32)
    bk_p = params["bk"][perm].astype(jnp.float32)
    bv_p = params["bv"][perm].astype(jnp.float32)
    wo_p = params["wo"][perm, :].astype(compute_dtype)                        # rows permuted
    bo = params["bo"].reshape(1, hidden).astype(jnp.float32)

    # --- Q/K/V projections hoisted out of the grid (plain XLA batched matmuls).
    def proj(w, b):
        return (jnp.dot(x, w, preferred_element_type=jnp.float32) + b).astype(compute_dtype)
    q = proj(wq_p, bq_p)                                                      # (B, N, H)
    k = proj(wk_p, bk_p)
    v = proj(wv_p, bv_p)

    has_kpad = key_pad is not None
    has_mask = attn_mask is not None

    dsz = jnp.dtype(compute_dtype).itemsize
    vmem_cap = _vmem_capacity_bytes()
    vmem_budget = max(32 * 1024 * 1024, (vmem_cap * 3) // 4)

    tn = n_tile if n_tile is not None else _pick_n_tile(
        N, hidden, head, dsz, score_dtype.itemsize, has_mask, has_kpad, with_score, vmem_budget)
    assert N % tn == 0, f"n_tile={tn} must divide N={N}"
    n_tiles = N // tn

    inputs = [q, k, v, wo_p, bo]
    in_specs = [
        pl.BlockSpec((None, N, hidden), lambda b, t: (b, 0, 0)),    # Q (resident per batch)
        pl.BlockSpec((None, tn, hidden), lambda b, t: (b, t, 0)),   # K row tile
        pl.BlockSpec((None, N, hidden), lambda b, t: (b, 0, 0)),    # V (resident per batch)
        # constant-index blocks: a second pipeline buffer is dead VMEM -> single-buffer them
        pl.BlockSpec((hidden, hidden), lambda b, t: (0, 0), pipeline_mode=pl.Buffered(1)),
        pl.BlockSpec((1, hidden), lambda b, t: (0, 0), pipeline_mode=pl.Buffered(1)),
    ]
    if has_kpad:
        inputs.append(key_pad.astype(jnp.float32).reshape(B, 1, N))
        in_specs.append(pl.BlockSpec((None, 1, N), lambda b, t: (b, 0, 0)))
    if has_mask:
        am = jnp.asarray(attn_mask, jnp.float32)
        # Accept torch-broadcast style trailing head dim of 1.
        if am.ndim == 4 and am.shape == (B, N, N, 1):
            am = am[..., 0]
        elif am.ndim == 3 and am.shape == (N, N, 1):
            am = am[..., 0]
        # TODO(synk): head-dependent attn_mask shapes (..., head > 1) are not supported;
        # the mask is broadcast over heads in-register inside the kernel.
        if am.ndim == 2 and am.shape == (N, N):
            inputs.append(am)
            in_specs.append(pl.BlockSpec((tn, N), lambda b, t: (t, 0)))
        elif am.ndim == 3 and am.shape == (B, N, N):
            inputs.append(am)
            in_specs.append(pl.BlockSpec((None, tn, N), lambda b, t: (b, t, 0)))
        else:
            raise ValueError("attn_mask must be (N,N), (B,N,N), (N,N,1) or (B,N,N,1)")

    kernel = functools.partial(
        _attention_kernel, head=head, head_dim=head_dim,
        has_kpad=has_kpad, has_mask=has_mask, with_score=with_score,
        compute_dtype=compute_dtype,
        approx_recip=(jnp.dtype(compute_dtype) != jnp.dtype(jnp.float32)))

    out_shape = [jax.ShapeDtypeStruct((B, N, hidden), compute_dtype)]
    out_specs = [pl.BlockSpec((None, tn, hidden), lambda b, t: (b, t, 0))]
    if with_score:
        out_shape.append(jax.ShapeDtypeStruct((B, head, N, N), score_dtype))
        out_specs.append(pl.BlockSpec((None, head, tn, N), lambda b, t: (b, 0, t, 0)))

    results = pl.pallas_call(
        kernel,
        out_shape=tuple(out_shape),
        grid_spec=pltpu.PrefetchScalarGridSpec(
            num_scalar_prefetch=0,
            grid=(B, n_tiles),
            in_specs=in_specs,
            out_specs=out_specs,
        ),
        compiler_params=pltpu.CompilerParams(
            dimension_semantics=("parallel", "parallel"),   # no cross-tile carry any more
            vmem_limit_bytes=int(vmem_budget),
        ),
    )(*inputs)

    if not with_score:
        out = results[0] if isinstance(results, (tuple, list)) else results
        return out, None
    out, score_hm = results
    if score_head_major:
        return out, score_hm
    return out, jnp.transpose(score_hm, (0, 2, 3, 1))   # (B, N, N, head), torch convention


def reference(x, params, head, key_pad=None, attn_mask=None):
    """Pure-JAX f32 replica of the PyTorch forward (eval mode), for validation."""
    B, N, F = x.shape
    hidden = params["wq"].shape[1]
    head_dim = hidden // head
    xf = x.astype(jnp.float32)
    p32 = {k: v.astype(jnp.float32) for k, v in params.items()}
    q = (xf @ p32["wq"] + p32["bq"]).reshape(B, N, head_dim, head)
    k = (xf @ p32["wk"] + p32["bk"]).reshape(B, N, head_dim, head)
    v = (xf @ p32["wv"] + p32["bv"]).reshape(B, N, head_dim, head)
    score = jnp.einsum("bnfh,bmfh->bnmh", k, q) / (head_dim ** 0.5)
    if attn_mask is not None:
        score = score + attn_mask.astype(jnp.float32)    # torch broadcast semantics
    if key_pad is not None:
        score = score - key_pad[:, None, :, None].astype(jnp.float32) * LARGE_NUMBER
    p = jax.nn.softmax(score, axis=2)
    out_v = jnp.einsum("bnmh,bmfh->bnfh", p, v).reshape(B, N, hidden)
    return out_v @ p32["wo"] + p32["bo"], score


if __name__ == "__main__":
    B, N, in_dim, hidden, head = 2, 8, 16, 32, 4

    key = jax.random.PRNGKey(0)
    ks = jax.random.split(key, 11)
    x = jax.random.normal(ks[0], (B, N, in_dim), jnp.float32)

    # deterministic synthetic parameters (torch Linear weights are (out,in); stored (in,out))
    params = {
        "wq": 0.1 * jax.random.normal(ks[1], (in_dim, hidden), jnp.float32),
        "bq": 0.1 * jax.random.normal(ks[2], (hidden,), jnp.float32),
        "wk": 0.1 * jax.random.normal(ks[3], (in_dim, hidden), jnp.float32),
        "bk": 0.1 * jax.random.normal(ks[4], (hidden,), jnp.float32),
        "wv": 0.1 * jax.random.normal(ks[5], (in_dim, hidden), jnp.float32),
        "bv": 0.1 * jax.random.normal(ks[6], (hidden,), jnp.float32),
        "wo": 0.1 * jax.random.normal(ks[7], (hidden, hidden), jnp.float32),
        "bo": 0.1 * jax.random.normal(ks[8], (hidden,), jnp.float32),
    }
    key_pad = jax.random.uniform(ks[9], (B, N)) > 0.8                 # bool key-padding mask
    attn_mask = 0.1 * jax.random.normal(ks[10], (N, N, 1), jnp.float32)  # torch-broadcast mask

    # --- f32 path with key-pad mask (exact softmax divide on the f32 path)
    out, score = attention_layer(x, params, head, key_pad=key_pad)
    jax.block_until_ready((out, score))
    out_ref, score_ref = reference(x, params, head, key_pad=key_pad)
    assert jnp.allclose(out, out_ref, rtol=1e-2, atol=1e-2), "output mismatch (key_pad)"
    assert jnp.allclose(score, score_ref, rtol=1e-4, atol=1e-2), "score mismatch (key_pad)"

    # --- f32 path with additive attention mask
    out_m, score_m = attention_layer(x, params, head, attn_mask=attn_mask)
    jax.block_until_ready((out_m, score_m))
    out_mr, score_mr = reference(x, params, head, attn_mask=attn_mask)
    assert jnp.allclose(out_m, out_mr, rtol=1e-2, atol=1e-2), "output mismatch (attn_mask)"
    assert jnp.allclose(score_m, score_mr, rtol=1e-4, atol=1e-2), "score mismatch (attn_mask)"

    # --- score skipped entirely (callers that discard it avoid the dominant HBM writeback)
    out_ns, _ = attention_layer(x, params, head, key_pad=key_pad, with_score=False)
    jax.block_until_ready(out_ns)
    assert jnp.allclose(out_ns, out_ref, rtol=1e-2, atol=1e-2), "output mismatch (no score)"

    # --- bf16 fast path (bf16 MXU operands, bf16 score writeback, f32 accumulation)
    x_bf = x.astype(jnp.bfloat16)
    params_bf = {k: v.astype(jnp.bfloat16) for k, v in params.items()}
    out_bf, score_bf = attention_layer(x_bf, params_bf, head, key_pad=key_pad)
    jax.block_until_ready((out_bf, score_bf))
    assert jnp.allclose(out_bf.astype(jnp.float32), out_ref, rtol=5e-2, atol=1e-1), \
        "bf16 output mismatch"

    print("KERNEL_OK")
</pallas_src>

<mosaic_0001>
module attributes {stable_mosaic.version = 11 : i64} {
  func.func @_attention_kernel(%arg0: i32, %arg1: i32, %arg2: memref<1x8x32xf32, #tpu.memory_space<vmem>>, %arg3: memref<1x8x32xf32, #tpu.memory_space<vmem>>, %arg4: memref<1x8x32xf32, #tpu.memory_space<vmem>>, %arg5: memref<32x32xf32, #tpu.memory_space<vmem>>, %arg6: memref<1x32xf32, #tpu.memory_space<vmem>>, %arg7: memref<1x1x8xf32, #tpu.memory_space<vmem>>, %arg8: memref<1x8x32xf32, #tpu.memory_space<vmem>>, %arg9: memref<1x4x8x8xf32, #tpu.memory_space<vmem>>) attributes {dimension_semantics = [#tpu.dimension_semantics<parallel>, #tpu.dimension_semantics<parallel>], iteration_bounds = array<i64: 2, 1>, scalar_prefetch = 0 : i64, scratch_operands = 0 : i64, tpu.core_type = #tpu.core_type<tc>, window_params = [{transform_indices = @transform_0, window_bounds = array<i64: 1, 8, 32>}, {transform_indices = @transform_1, window_bounds = array<i64: 1, 8, 32>}, {transform_indices = @transform_2, window_bounds = array<i64: 1, 8, 32>}, {pipeline_mode = #tpu.pipeline_mode<synchronous>, transform_indices = @transform_3, window_bounds = array<i64: 32, 32>}, {pipeline_mode = #tpu.pipeline_mode<synchronous>, transform_indices = @transform_4, window_bounds = array<i64: 1, 32>}, {transform_indices = @transform_5, window_bounds = array<i64: 1, 1, 8>}, {transform_indices = @transform_6, window_bounds = array<i64: 1, 8, 32>}, {transform_indices = @transform_7, window_bounds = array<i64: 1, 4, 8, 8>}]} {
    %c0 = arith.constant 0 : index
    %c0_0 = arith.constant 0 : index
    %c0_1 = arith.constant 0 : index
    %0 = vector.load %arg7[%c0, %c0_0, %c0_1] : memref<1x1x8xf32, #tpu.memory_space<vmem>>, vector<1x1x8xf32>
    %1 = vector.shape_cast %0 : vector<1x1x8xf32> to vector<1x8xf32>
    %cst = arith.constant 1.000000e+10 : f32
    %2 = vector.broadcast %cst : f32 to vector<1x8xf32>
    %3 = arith.mulf %1, %2 : vector<1x8xf32>
    %4 = vector.shape_cast %3 : vector<1x8xf32> to vector<1x8xf32>
    %5 = vector.broadcast %4 : vector<1x8xf32> to vector<8x8xf32>
    %c0_2 = arith.constant 0 : index
    %c0_3 = arith.constant 0 : index
    %c0_4 = arith.constant 0 : index
    %6 = vector.load %arg2[%c0_2, %c0_3, %c0_4] : memref<1x8x32xf32, #tpu.memory_space<vmem>>, vector<1x8x8xf32>
    %7 = vector.shape_cast %6 : vector<1x8x8xf32> to vector<8x8xf32>
    %c0_5 = arith.constant 0 : index
    %c0_6 = arith.constant 0 : index
    %c0_7 = arith.constant 0 : index
    %8 = vector.load %arg3[%c0_5, %c0_6, %c0_7] : memref<1x8x32xf32, #tpu.memory_space<vmem>>, vector<1x8x8xf32>
    %9 = vector.shape_cast %8 : vector<1x8x8xf32> to vector<8x8xf32>
    %c0_8 = arith.constant 0 : index
    %c0_9 = arith.constant 0 : index
    %c0_10 = arith.constant 0 : index
    %10 = vector.load %arg4[%c0_8, %c0_9, %c0_10] : memref<1x8x32xf32, #tpu.memory_space<vmem>>, vector<1x8x8xf32>
    %11 = vector.shape_cast %10 : vector<1x8x8xf32> to vector<8x8xf32>
    %cst_11 = arith.constant dense<0.000000e+00> : vector<8x8xf32>
    %12 = tpu.matmul %9, %7, %cst_11 {dimension_numbers = #tpu.dot_dimension_numbers<[1], [1], [0], [0], [0, 0, 1, 0], [], []>} : vector<8x8xf32>, vector<8x8xf32>, vector<8x8xf32> -> vector<8x8xf32>
    %cst_12 = arith.constant 0.353553385 : f32
    %13 = vector.broadcast %cst_12 : f32 to vector<8x8xf32>
    %14 = arith.mulf %12, %13 : vector<8x8xf32>
    %15 = arith.subf %14, %5 : vector<8x8xf32>
    %c0_13 = arith.constant 0 : index
    %c0_14 = arith.constant 0 : index
    %c0_15 = arith.constant 0 : index
    %c0_16 = arith.constant 0 : index
    %16 = vector.load %arg9[%c0_13, %c0_14, %c0_15, %c0_16] : memref<1x4x8x8xf32, #tpu.memory_space<vmem>>, vector<1x1x8x8xf32>
    %17 = vector.shape_cast %16 : vector<1x1x8x8xf32> to vector<8x8xf32>
    %18 = vector.shape_cast %15 : vector<8x8xf32> to vector<1x1x8x8xf32>
    tpu.vector_store %arg9[%c0_13, %c0_14, %c0_15, %c0_16], %18 {strides = array<i32>} : memref<1x4x8x8xf32, #tpu.memory_space<vmem>>, vector<1x1x8x8xf32>,
    %cst_17 = arith.constant dense<0xFF800000> : vector<8xf32>
    %19 = vector.multi_reduction <maximumf>, %15, %cst_17 [1] : vector<8x8xf32> to vector<8xf32>
    %20 = vector.shape_cast %19 : vector<8xf32> to vector<8x1xf32>
    %21 = vector.broadcast %20 : vector<8x1xf32> to vector<8x8xf32>
    %22 = arith.subf %15, %21 : vector<8x8xf32>
    %23 = math.exp %22 : vector<8x8xf32>
    %cst_18 = arith.constant dense<0.000000e+00> : vector<8xf32>
    %24 = vector.multi_reduction <add>, %23, %cst_18 [1] : vector<8x8xf32> to vector<8xf32>
    %25 = vector.shape_cast %24 : vector<8xf32> to vector<8x1xf32>
    %26 = vector.broadcast %25 : vector<8x1xf32> to vector<8x8xf32>
    %27 = arith.divf %23, %26 : vector<8x8xf32>
    %cst_19 = arith.constant dense<0.000000e+00> : vector<8x8xf32>
    %28 = tpu.matmul %27, %11, %cst_19 {dimension_numbers = #tpu.dot_dimension_numbers<[1], [0], [0], [1], [0, 0, 1, 1], [], []>} : vector<8x8xf32>, vector<8x8xf32>, vector<8x8xf32> -> vector<8x8xf32>
    %c0_20 = arith.constant 0 : index
    %c0_21 = arith.constant 0 : index
    %c8 = arith.constant 8 : index
    %29 = vector.load %arg2[%c0_20, %c0_21, %c8] : memref<1x8x32xf32, #tpu.memory_space<vmem>>, vector<1x8x8xf32>
    %30 = vector.shape_cast %29 : vector<1x8x8xf32> to vector<8x8xf32>
    %c0_22 = arith.constant 0 : index
    %c0_23 = arith.constant 0 : index
    %c8_24 = arith.constant 8 : index
    %31 = vector.load %arg3[%c0_22, %c0_23, %c8_24] : memref<1x8x32xf32, #tpu.memory_space<vmem>>, vector<1x8x8xf32>
    %32 = vector.shape_cast %31 : vector<1x8x8xf32> to vector<8x8xf32>
    %c0_25 = arith.constant 0 : index
    %c0_26 = arith.constant 0 : index
    %c8_27 = arith.constant 8 : index
    %33 = vector.load %arg4[%c0_25, %c0_26, %c8_27] : memref<1x8x32xf32, #tpu.memory_space<vmem>>, vector<1x8x8xf32>
    %34 = vector.shape_cast %33 : vector<1x8x8xf32> to vector<8x8xf32>
    %cst_28 = arith.constant dense<0.000000e+00> : vector<8x8xf32>
    %35 = tpu.matmul %32, %30, %cst_28 {dimension_numbers = #tpu.dot_dimension_numbers<[1], [1], [0], [0], [0, 0, 1, 0], [], []>} : vector<8x8xf32>, vector<8x8xf32>, vector<8x8xf32> -> vector<8x8xf32>
    %cst_29 = arith.constant 0.353553385 : f32
    %36 = vector.broadcast %cst_29 : f32 to vector<8x8xf32>
    %37 = arith.mulf %35, %36 : vector<8x8xf32>
    %38 = arith.subf %37, %5 : vector<8x8xf32>
    %c0_30 = arith.constant 0 : index
    %c1 = arith.constant 1 : index
    %c0_31 = arith.constant 0 : index
    %c0_32 = arith.constant 0 : index
    %39 = vector.load %arg9[%c0_30, %c1, %c0_31, %c0_32] : memref<1x4x8x8xf32, #tpu.memory_space<vmem>>, vector<1x1x8x8xf32>
    %40 = vector.shape_cast %39 : vector<1x1x8x8xf32> to vector<8x8xf32>
    %41 = vector.shape_cast %38 : vector<8x8xf32> to vector<1x1x8x8xf32>
    tpu.vector_store %arg9[%c0_30, %c1, %c0_31, %c0_32], %41 {strides = array<i32>} : memref<1x4x8x8xf32, #tpu.memory_space<vmem>>, vector<1x1x8x8xf32>,
    %cst_33 = arith.constant dense<0xFF800000> : vector<8xf32>
    %42 = vector.multi_reduction <maximumf>, %38, %cst_33 [1] : vector<8x8xf32> to vector<8xf32>
    %43 = vector.shape_cast %42 : vector<8xf32> to vector<8x1xf32>
    %44 = vector.broadcast %43 : vector<8x1xf32> to vector<8x8xf32>
    %45 = arith.subf %38, %44 : vector<8x8xf32>
    %46 = math.exp %45 : vector<8x8xf32>
    %cst_34 = arith.constant dense<0.000000e+00> : vector<8xf32>
    %47 = vector.multi_reduction <add>, %46, %cst_34 [1] : vector<8x8xf32> to vector<8xf32>
    %48 = vector.shape_cast %47 : vector<8xf32> to vector<8x1xf32>
    %49 = vector.broadcast %48 : vector<8x1xf32> to vector<8x8xf32>
    %50 = arith.divf %46, %49 : vector<8x8xf32>
    %cst_35 = arith.constant dense<0.000000e+00> : vector<8x8xf32>
    %51 = tpu.matmul %50, %34, %cst_35 {dimension_numbers = #tpu.dot_dimension_numbers<[1], [0], [0], [1], [0, 0, 1, 1], [], []>} : vector<8x8xf32>, vector<8x8xf32>, vector<8x8xf32> -> vector<8x8xf32>
    %c0_36 = arith.constant 0 : index
    %c0_37 = arith.constant 0 : index
    %c16 = arith.constant 16 : index
    %52 = vector.load %arg2[%c0_36, %c0_37, %c16] : memref<1x8x32xf32, #tpu.memory_space<vmem>>, vector<1x8x8xf32>
    %53 = vector.shape_cast %52 : vector<1x8x8xf32> to vector<8x8xf32>
    %c0_38 = arith.constant 0 : index
    %c0_39 = arith.constant 0 : index
    %c16_40 = arith.constant 16 : index
    %54 = vector.load %arg3[%c0_38, %c0_39, %c16_40] : memref<1x8x32xf32, #tpu.memory_space<vmem>>, vector<1x8x8xf32>
    %55 = vector.shape_cast %54 : vector<1x8x8xf32> to vector<8x8xf32>
    %c0_41 = arith.constant 0 : index
    %c0_42 = arith.constant 0 : index
    %c16_43 = arith.constant 16 : index
    %56 = vector.load %arg4[%c0_41, %c0_42, %c16_43] : memref<1x8x32xf32, #tpu.memory_space<vmem>>, vector<1x8x8xf32>
    %57 = vector.shape_cast %56 : vector<1x8x8xf32> to vector<8x8xf32>
    %cst_44 = arith.constant dense<0.000000e+00> : vector<8x8xf32>
    %58 = tpu.matmul %55, %53, %cst_44 {dimension_numbers = #tpu.dot_dimension_numbers<[1], [1], [0], [0], [0, 0, 1, 0], [], []>} : vector<8x8xf32>, vector<8x8xf32>, vector<8x8xf32> -> vector<8x8xf32>
    %cst_45 = arith.constant 0.353553385 : f32
    %59 = vector.broadcast %cst_45 : f32 to vector<8x8xf32>
    %60 = arith.mulf %58, %59 : vector<8x8xf32>
    %61 = arith.subf %60, %5 : vector<8x8xf32>
    %c0_46 = arith.constant 0 : index
    %c2 = arith.constant 2 : index
    %c0_47 = arith.constant 0 : index
    %c0_48 = arith.constant 0 : index
    %62 = vector.load %arg9[%c0_46, %c2, %c0_47, %c0_48] : memref<1x4x8x8xf32, #tpu.memory_space<vmem>>, vector<1x1x8x8xf32>
    %63 = vector.shape_cast %62 : vector<1x1x8x8xf32> to vector<8x8xf32>
    %64 = vector.shape_cast %61 : vector<8x8xf32> to vector<1x1x8x8xf32>
    tpu.vector_store %arg9[%c0_46, %c2, %c0_47, %c0_48], %64 {strides = array<i32>} : memref<1x4x8x8xf32, #tpu.memory_space<vmem>>, vector<1x1x8x8xf32>,
    %cst_49 = arith.constant dense<0xFF800000> : vector<8xf32>
    %65 = vector.multi_reduction <maximumf>, %61, %cst_49 [1] : vector<8x8xf32> to vector<8xf32>
    %66 = vector.shape_cast %65 : vector<8xf32> to vector<8x1xf32>
    %67 = vector.broadcast %66 : vector<8x1xf32> to vector<8x8xf32>
    %68 = arith.subf %61, %67 : vector<8x8xf32>
    %69 = math.exp %68 : vector<8x8xf32>
    %cst_50 = arith.constant dense<0.000000e+00> : vector<8xf32>
    %70 = vector.multi_reduction <add>, %69, %cst_50 [1] : vector<8x8xf32> to vector<8xf32>
    %71 = vector.shape_cast %70 : vector<8xf32> to vector<8x1xf32>
    %72 = vector.broadcast %71 : vector<8x1xf32> to vector<8x8xf32>
    %73 = arith.divf %69, %72 : vector<8x8xf32>
    %cst_51 = arith.constant dense<0.000000e+00> : vector<8x8xf32>
    %74 = tpu.matmul %73, %57, %cst_51 {dimension_numbers = #tpu.dot_dimension_numbers<[1], [0], [0], [1], [0, 0, 1, 1], [], []>} : vector<8x8xf32>, vector<8x8xf32>, vector<8x8xf32> -> vector<8x8xf32>
    %c0_52 = arith.constant 0 : index
    %c0_53 = arith.constant 0 : index
    %c24 = arith.constant 24 : index
    %75 = vector.load %arg2[%c0_52, %c0_53, %c24] : memref<1x8x32xf32, #tpu.memory_space<vmem>>, vector<1x8x8xf32>
    %76 = vector.shape_cast %75 : vector<1x8x8xf32> to vector<8x8xf32>
    %c0_54 = arith.constant 0 : index
    %c0_55 = arith.constant 0 : index
    %c24_56 = arith.constant 24 : index
    %77 = vector.load %arg3[%c0_54, %c0_55, %c24_56] : memref<1x8x32xf32, #tpu.memory_space<vmem>>, vector<1x8x8xf32>
    %78 = vector.shape_cast %77 : vector<1x8x8xf32> to vector<8x8xf32>
    %c0_57 = arith.constant 0 : index
    %c0_58 = arith.constant 0 : index
    %c24_59 = arith.constant 24 : index
    %79 = vector.load %arg4[%c0_57, %c0_58, %c24_59] : memref<1x8x32xf32, #tpu.memory_space<vmem>>, vector<1x8x8xf32>
    %80 = vector.shape_cast %79 : vector<1x8x8xf32> to vector<8x8xf32>
    %cst_60 = arith.constant dense<0.000000e+00> : vector<8x8xf32>
    %81 = tpu.matmul %78, %76, %cst_60 {dimension_numbers = #tpu.dot_dimension_numbers<[1], [1], [0], [0], [0, 0, 1, 0], [], []>} : vector<8x8xf32>, vector<8x8xf32>, vector<8x8xf32> -> vector<8x8xf32>
    %cst_61 = arith.constant 0.353553385 : f32
    %82 = vector.broadcast %cst_61 : f32 to vector<8x8xf32>
    %83 = arith.mulf %81, %82 : vector<8x8xf32>
    %84 = arith.subf %83, %5 : vector<8x8xf32>
    %c0_62 = arith.constant 0 : index
    %c3 = arith.constant 3 : index
    %c0_63 = arith.constant 0 : index
    %c0_64 = arith.constant 0 : index
    %85 = vector.load %arg9[%c0_62, %c3, %c0_63, %c0_64] : memref<1x4x8x8xf32, #tpu.memory_space<vmem>>, vector<1x1x8x8xf32>
    %86 = vector.shape_cast %85 : vector<1x1x8x8xf32> to vector<8x8xf32>
    %87 = vector.shape_cast %84 : vector<8x8xf32> to vector<1x1x8x8xf32>
    tpu.vector_store %arg9[%c0_62, %c3, %c0_63, %c0_64], %87 {strides = array<i32>} : memref<1x4x8x8xf32, #tpu.memory_space<vmem>>, vector<1x1x8x8xf32>,
    %cst_65 = arith.constant dense<0xFF800000> : vector<8xf32>
    %88 = vector.multi_reduction <maximumf>, %84, %cst_65 [1] : vector<8x8xf32> to vector<8xf32>
    %89 = vector.shape_cast %88 : vector<8xf32> to vector<8x1xf32>
    %90 = vector.broadcast %89 : vector<8x1xf32> to vector<8x8xf32>
    %91 = arith.subf %84, %90 : vector<8x8xf32>
    %92 = math.exp %91 : vector<8x8xf32>
    %cst_66 = arith.constant dense<0.000000e+00> : vector<8xf32>
    %93 = vector.multi_reduction <add>, %92, %cst_66 [1] : vector<8x8xf32> to vector<8xf32>
    %94 = vector.shape_cast %93 : vector<8xf32> to vector<8x1xf32>
    %95 = vector.broadcast %94 : vector<8x1xf32> to vector<8x8xf32>
    %96 = arith.divf %92, %95 : vector<8x8xf32>
    %cst_67 = arith.constant dense<0.000000e+00> : vector<8x8xf32>
    %97 = tpu.matmul %96, %80, %cst_67 {dimension_numbers = #tpu.dot_dimension_numbers<[1], [0], [0], [1], [0, 0, 1, 1], [], []>} : vector<8x8xf32>, vector<8x8xf32>, vector<8x8xf32> -> vector<8x8xf32>
    %98 = tpu.concatenate %28, %51, %74, %97 in 1 : vector<8x8xf32>, vector<8x8xf32>, vector<8x8xf32>, vector<8x8xf32> -> vector<8x32xf32>
    %c0_68 = arith.constant 0 : index
    %c0_69 = arith.constant 0 : index
    %99 = vector.load %arg5[%c0_68, %c0_69] : memref<32x32xf32, #tpu.memory_space<vmem>>, vector<32x32xf32>
    %cst_70 = arith.constant dense<0.000000e+00> : vector<8x32xf32>
    %100 = tpu.matmul %98, %99, %cst_70 {dimension_numbers = #tpu.dot_dimension_numbers<[1], [0], [0], [1], [0, 0, 1, 1], [], []>} : vector<8x32xf32>, vector<32x32xf32>, vector<8x32xf32> -> vector<8x32xf32>
    %c0_71 = arith.constant 0 : index
    %c0_72 = arith.constant 0 : index
    %101 = vector.load %arg6[%c0_71, %c0_72] : memref<1x32xf32, #tpu.memory_space<vmem>>, vector<1x32xf32>
    %102 = vector.broadcast %101 : vector<1x32xf32> to vector<8x32xf32>
    %103 = arith.addf %100, %102 : vector<8x32xf32>
    %c0_73 = arith.constant 0 : index
    %c0_74 = arith.constant 0 : index
    %c0_75 = arith.constant 0 : index
    %104 = vector.load %arg8[%c0_73, %c0_74, %c0_75] : memref<1x8x32xf32, #tpu.memory_space<vmem>>, vector<1x8x32xf32>
    %105 = vector.shape_cast %104 : vector<1x8x32xf32> to vector<8x32xf32>
    %106 = vector.shape_cast %103 : vector<8x32xf32> to vector<1x8x32xf32>
    tpu.vector_store %arg8[%c0_73, %c0_74, %c0_75], %106 {strides = array<i32>} : memref<1x8x32xf32, #tpu.memory_space<vmem>>, vector<1x8x32xf32>,
    return
  }
  func.func @transform_0(%arg0: i32, %arg1: i32) -> (i32, i32, i32) {
    %c0_i32 = arith.constant 0 : i32
    %c0_i32_0 = arith.constant 0 : i32
    %c0_i32_1 = arith.constant 0 : i32
    return %arg0, %c0_i32, %c0_i32_0 : i32, i32, i32
  }
  func.func @transform_1(%arg0: i32, %arg1: i32) -> (i32, i32, i32) {
    %c0_i32 = arith.constant 0 : i32
    %c0_i32_0 = arith.constant 0 : i32
    return %arg0, %arg1, %c0_i32 : i32, i32, i32
  }
  func.func @transform_2(%arg0: i32, %arg1: i32) -> (i32, i32, i32) {
    %c0_i32 = arith.constant 0 : i32
    %c0_i32_0 = arith.constant 0 : i32
    %c0_i32_1 = arith.constant 0 : i32
    return %arg0, %c0_i32, %c0_i32_0 : i32, i32, i32
  }
  func.func @transform_3(%arg0: i32, %arg1: i32) -> (i32, i32) {
    %c0_i32 = arith.constant 0 : i32
    %c0_i32_0 = arith.constant 0 : i32
    %c0_i32_1 = arith.constant 0 : i32
    return %c0_i32, %c0_i32_0 : i32, i32
  }
  func.func @transform_4(%arg0: i32, %arg1: i32) -> (i32, i32) {
    %c0_i32 = arith.constant 0 : i32
    %c0_i32_0 = arith.constant 0 : i32
    %c0_i32_1 = arith.constant 0 : i32
    return %c0_i32, %c0_i32_0 : i32, i32
  }
  func.func @transform_5(%arg0: i32, %arg1: i32) -> (i32, i32, i32) {
    %c0_i32 = arith.constant 0 : i32
    %c0_i32_0 = arith.constant 0 : i32
    %c0_i32_1 = arith.constant 0 : i32
    return %arg0, %c0_i32, %c0_i32_0 : i32, i32, i32
  }
  func.func @transform_6(%arg0: i32, %arg1: i32) -> (i32, i32, i32) {
    %c0_i32 = arith.constant 0 : i32
    %c0_i32_0 = arith.constant 0 : i32
    return %arg0, %arg1, %c0_i32 : i32, i32, i32
  }
  func.func @transform_7(%arg0: i32, %arg1: i32) -> (i32, i32, i32, i32) {
    %c0_i32 = arith.constant 0 : i32
    %c0_i32_0 = arith.constant 0 : i32
    %c0_i32_1 = arith.constant 0 : i32
    return %arg0, %c0_i32, %arg1, %c0_i32_0 : i32, i32, i32, i32
  }
}

</mosaic_0001>

<llo_original>
// kernel: tpu_custom_call.1
$region0: #{tpu_custom_call.1}
  #allocation0 [shape = 'u32[]', space=smem, size = 0x4, offset = 0x4, fixed_abs, tag = 'smem constant byte address 0x4 - core index']
  #allocation1 [shape = 'u32[72,128]{1,0:T(1,128)}', space=vmem, size = 0x9000, scoped, tag = 'internal scratch']
  %s0 = inlined_call_operand.hbm [shape: f32[2,8,32], index: 0, kind: input, shape index: {}]
  %s1 = inlined_call_operand.hbm [shape: f32[2,8,32], index: 1, kind: input, shape index: {}]
  %s2 = inlined_call_operand.hbm [shape: f32[2,8,32], index: 2, kind: input, shape index: {}]
  %s3 = inlined_call_operand.hbm [shape: f32[32,32], index: 3, kind: input, shape index: {}]
  %s4 = inlined_call_operand.vmem [shape: f32[1,32], index: 4, kind: input, shape index: {}]
  %s5 = inlined_call_operand.vmem [shape: f32[2,1,8], index: 5, kind: input, shape index: {}]
  %s6 = inlined_call_operand.hbm [shape: f32[2,8,32], index: 6, kind: output, shape index: {0}]
  %s7 = inlined_call_operand.hbm [shape: f32[2,4,8,8], index: 7, kind: output, shape index: {1}]
  %8 = xla_tuple %s6, %s7
  %s9 = sld [smem:[#allocation0]]
  $region81: #{tpu_custom_call.1} parent=0
    _
  %s11 = ssub.s32 1, %s9
  %s12 = scalar_select 0, %s11, %s9
  $region1: #{tpu_custom_call.1} parent=0
    #allocation2 [shape = 'u8[8192]{0}', space=vmem, size = 0x2000, scoped, tag = 'input window, operand 0']
    #allocation3 [shape = 's32[2]{0}', space=sflag, size = 0x8, scoped, tag = 'scoped memory for tpu_custom_call.1']
    #allocation4 [shape = 's32[2]{0}', space=sflag, size = 0x8, scoped, tag = 'scoped memory for tpu_custom_call.1']
    #allocation5 [shape = 'u8[8192]{0}', space=vmem, size = 0x2000, scoped, tag = 'input window, operand 1']
    #allocation6 [shape = 's32[2]{0}', space=sflag, size = 0x8, scoped, tag = 'scoped memory for tpu_custom_call.1']
    #allocation7 [shape = 'u8[8192]{0}', space=vmem, size = 0x2000, scoped, tag = 'input window, operand 2']
    #allocation8 [shape = 'u8[16384]{0}', space=vmem, size = 0x4000, scoped, tag = 'input window, operand 3, single buffered']
    #allocation9 [shape = 's32[1]{0}', space=sflag, size = 0x4, scoped, tag = 'scoped memory for tpu_custom_call.1']
    #allocation10 [shape = 'u8[8192]{0}', space=vmem, size = 0x2000, scoped, tag = 'output window, operand 0']
    #allocation11 [shape = 'u8[32768]{0}', space=vmem, size = 0x8000, scoped, tag = 'output window, operand 1']
    #allocation12 [shape = 's32[2]{0}', space=sflag, size = 0x8, scoped, tag = 'scoped memory for tpu_custom_call.1']
    %13 = vsyncpa [#allocation3], 0
    %s14 = scalar_lea.sflag [#allocation3], 1
    %15 = vsyncpa %s14, 0
    %16 = vsyncpa [#allocation6], 0
    %s17 = scalar_lea.sflag [#allocation6], 1
    %18 = vsyncpa %s17, 0
    %19 = vsyncpa [#allocation9], 0
    %20 = vsyncpa [#allocation4], 0
    %s21 = scalar_lea.sflag [#allocation4], 1
    %22 = vsyncpa %s21, 0
    %23 = vsyncpa [#allocation12], 0
    %s24 = scalar_lea.sflag [#allocation12], 1
    %25 = vsyncpa %s24, 0
    loop: start=0, step=1, limit=4
    $region2: #{tpu_custom_call.1} parent=1 // loop_pre_header
      _
    $region3: #{tpu_custom_call.1} parent=1 // loop_header
      %s27 = sphi 0, %s31
      %p28 = scmp.ge.s32.totalorder %s27, 4
      %s34 = sphi 0, %s46
      %s35 = sphi 0, %s42
      %s36 = sphi 0, %s34
      %s37 = sphi 0, %s35
      %s38 = sphi 0, %s36
      %s39 = sphi 0, %s37
      %s49 = sphi 0, %s51
      %s52 = sphi 0, %s49
      %s53 = sphi 0, %s52
      %s69 = sphi 0, %s53
      %s77 = sphi 0, %s79
      %s80 = sphi 0, %s77
      %s81 = sphi 0, %s80
      %s97 = sphi 0, %s81
      %s103 = sphi 0, %s105
      %s106 = sphi 0, %s103
      %s107 = sphi 0, %s106
      %s123 = sphi 0, %s107
      %s127 = sphi 0, %s127
      %s129 = sphi 0, %s127
      %s130 = sphi 0, %s129
      %s144 = sphi 0, %s130
      %s148 = sphi 0, %s148
      %s150 = sphi 0, %s148
      %s151 = sphi 0, %s150
      %s165 = sphi 0, %s151
      %s171 = sphi 0, %s173
      %s174 = sphi 0, %s171
      %s175 = sphi 0, %s174
      %s191 = sphi 0, %s175
      %s199 = sphi 0, %s201
      %s202 = sphi 0, %s199
      %s203 = sphi 0, %s202
      %s219 = sphi 0, %s203
      %s227 = sphi 0, %s229
      %s230 = sphi 0, %s227
      %s231 = sphi 0, %s230
      %s247 = sphi 0, %s231
    $region4: #{tpu_custom_call.1} parent=1 // loop_header_branch
      %30 = sbr.rel (%p28) target = $region8
    $region5: #{tpu_custom_call.1} parent=1 // loop_body
      %s32 = ssub.s32 %s27, 1
      %s33 = ssub.s32 %s27, 2
      %s40 = sadd.s32 1, %s35
      %p41 = scmp.ge.s32.totalorder %s40, 1
      %s42 = scalar_select %p41, 0, %s40
      %s43 = sadd.s32 1, %s34
      %s44 = scalar_select %p41, %s43, %s34
      %p45 = scmp.ge.s32.totalorder %s44, 2
      %s46 = scalar_select %p45, 0, %s44
      %s47 = ssub.s32 %s34, %s46
      %p48 = scmp.eq.s32.totalorder %s47, 0
      %s50 = sadd.s32 %s49, 1
      %s51 = scalar_select %p48, %s49, %s50
      %p54 = pneg %p48
      %p55 = scmp.eq.s32.totalorder %s27, 1
      %p56 = por %p54, %p55
      %p57 = scmp.ne.s32.totalorder %s49, %s52
      %p58 = scmp.eq.s32.totalorder %s27, 0
      %p59 = por %p57, %p58
      %p60 = scmp.ne.s32.totalorder %s49, %s52
      %p61 = scmp.eq.s32.totalorder %s32, 1
      %p62 = por %p60, %p61
      %p63 = scmp.ne.s32.totalorder %s52, %s53
      %p64 = scmp.eq.s32.totalorder %s32, 0
      %p65 = por %p63, %p64
      %p66 = scmp.ne.s32.totalorder %s52, %s53
      %p67 = scmp.eq.s32.totalorder %s33, 1
      %p68 = por %p66, %p67
      %p70 = scmp.ne.s32.totalorder %s53, %s69
      %p71 = scmp.eq.s32.totalorder %s33, 0
      %p72 = por %p70, %p71
      %s73 = ssub.s32 %s34, %s46
      %s74 = ssub.s32 %s35, %s42
      %s75 = sor.u32 %s73, %s74
      %p76 = scmp.eq.s32.totalorder %s75, 0
      %s78 = sadd.s32 %s77, 1
      %s79 = scalar_select %p76, %s77, %s78
      %p82 = pneg %p76
      %p83 = scmp.eq.s32.totalorder %s27, 1
      %p84 = por %p82, %p83
      %p85 = scmp.ne.s32.totalorder %s77, %s80
      %p86 = scmp.eq.s32.totalorder %s27, 0
      %p87 = por %p85, %p86
      %p88 = scmp.ne.s32.totalorder %s77, %s80
      %p89 = scmp.eq.s32.totalorder %s32, 1
      %p90 = por %p88, %p89
      %p91 = scmp.ne.s32.totalorder %s80, %s81
      %p92 = scmp.eq.s32.totalorder %s32, 0
      %p93 = por %p91, %p92
      %p94 = scmp.ne.s32.totalorder %s80, %s81
      %p95 = scmp.eq.s32.totalorder %s33, 1
      %p96 = por %p94, %p95
      %p98 = scmp.ne.s32.totalorder %s81, %s97
      %p99 = scmp.eq.s32.totalorder %s33, 0
      %p100 = por %p98, %p99
      %s101 = ssub.s32 %s34, %s46
      %p102 = scmp.eq.s32.totalorder %s101, 0
      %s104 = sadd.s32 %s103, 1
      %s105 = scalar_select %p102, %s103, %s104
      %p108 = pneg %p102
      %p109 = scmp.eq.s32.totalorder %s27, 1
      %p110 = por %p108, %p109
      %p111 = scmp.ne.s32.totalorder %s103, %s106
      %p112 = scmp.eq.s32.totalorder %s27, 0
      %p113 = por %p111, %p112
      %p114 = scmp.ne.s32.totalorder %s103, %s106
      %p115 = scmp.eq.s32.totalorder %s32, 1
      %p116 = por %p114, %p115
      %p117 = scmp.ne.s32.totalorder %s106, %s107
      %p118 = scmp.eq.s32.totalorder %s32, 0
      %p119 = por %p117, %p118
      %p120 = scmp.ne.s32.totalorder %s106, %s107
      %p121 = scmp.eq.s32.totalorder %s33, 1
      %p122 = por %p120, %p121
      %p124 = scmp.ne.s32.totalorder %s107, %s123
      %p125 = scmp.eq.s32.totalorder %s33, 0
      %p126 = por %p124, %p125
      %s128 = sadd.s32 %s127, 1
      %p131 = scmp.eq.s32.totalorder %s27, 1
      %p132 = scmp.ne.s32.totalorder %s127, %s129
      %p133 = scmp.eq.s32.totalorder %s27, 0
      %p134 = por %p132, %p133
      %p135 = scmp.ne.s32.totalorder %s127, %s129
      %p136 = scmp.eq.s32.totalorder %s32, 1
      %p137 = por %p135, %p136
      %p138 = scmp.ne.s32.totalorder %s129, %s130
      %p139 = scmp.eq.s32.totalorder %s32, 0
      %p140 = por %p138, %p139
      %p141 = scmp.ne.s32.totalorder %s129, %s130
      %p142 = scmp.eq.s32.totalorder %s33, 1
      %p143 = por %p141, %p142
      %p145 = scmp.ne.s32.totalorder %s130, %s144
      %p146 = scmp.eq.s32.totalorder %s33, 0
      %p147 = por %p145, %p146
      %s149 = sadd.s32 %s148, 1
      %p152 = scmp.eq.s32.totalorder %s27, 1
      %p153 = scmp.ne.s32.totalorder %s148, %s150
      %p154 = scmp.eq.s32.totalorder %s27, 0
      %p155 = por %p153, %p154
      %p156 = scmp.ne.s32.totalorder %s148, %s150
      %p157 = scmp.eq.s32.totalorder %s32, 1
      %p158 = por %p156, %p157
      %p159 = scmp.ne.s32.totalorder %s150, %s151
      %p160 = scmp.eq.s32.totalorder %s32, 0
      %p161 = por %p159, %p160
      %p162 = scmp.ne.s32.totalorder %s150, %s151
      %p163 = scmp.eq.s32.totalorder %s33, 1
      %p164 = por %p162, %p163
      %p166 = scmp.ne.s32.totalorder %s151, %s165
      %p167 = scmp.eq.s32.totalorder %s33, 0
      %p168 = por %p166, %p167
      %s169 = ssub.s32 %s34, %s46
      %p170 = scmp.eq.s32.totalorder %s169, 0
      %s172 = sadd.s32 %s171, 1
      %s173 = scalar_select %p170, %s171, %s172
      %p176 = pneg %p170
      %p177 = scmp.eq.s32.totalorder %s27, 1
      %p178 = por %p176, %p177
      %p179 = scmp.ne.s32.totalorder %s171, %s174
      %p180 = scmp.eq.s32.totalorder %s27, 0
      %p181 = por %p179, %p180
      %p182 = scmp.ne.s32.totalorder %s171, %s174
      %p183 = scmp.eq.s32.totalorder %s32, 1
      %p184 = por %p182, %p183
      %p185 = scmp.ne.s32.totalorder %s174, %s175
      %p186 = scmp.eq.s32.totalorder %s32, 0
      %p187 = por %p185, %p186
      %p188 = scmp.ne.s32.totalorder %s174, %s175
      %p189 = scmp.eq.s32.totalorder %s33, 1
      %p190 = por %p188, %p189
      %p192 = scmp.ne.s32.totalorder %s175, %s191
      %p193 = scmp.eq.s32.totalorder %s33, 0
      %p194 = por %p192, %p193
      %s195 = ssub.s32 %s34, %s46
      %s196 = ssub.s32 %s35, %s42
      %s197 = sor.u32 %s195, %s196
      %p198 = scmp.eq.s32.totalorder %s197, 0
      %s200 = sadd.s32 %s199, 1
      %s201 = scalar_select %p198, %s199, %s200
      %p204 = pneg %p198
      %p205 = scmp.eq.s32.totalorder %s27, 1
      %p206 = por %p204, %p205
      %p207 = scmp.ne.s32.totalorder %s199, %s202
      %p208 = scmp.eq.s32.totalorder %s27, 0
      %p209 = por %p207, %p208
      %p210 = scmp.ne.s32.totalorder %s199, %s202
      %p211 = scmp.eq.s32.totalorder %s32, 1
      %p212 = por %p210, %p211
      %p213 = scmp.ne.s32.totalorder %s202, %s203
      %p214 = scmp.eq.s32.totalorder %s32, 0
      %p215 = por %p213, %p214
      %p216 = scmp.ne.s32.totalorder %s202, %s203
      %p217 = scmp.eq.s32.totalorder %s33, 1
      %p218 = por %p216, %p217
      %p220 = scmp.ne.s32.totalorder %s203, %s219
      %p221 = scmp.eq.s32.totalorder %s33, 0
      %p222 = por %p220, %p221
      %s223 = ssub.s32 %s34, %s46
      %s224 = ssub.s32 %s35, %s42
      %s225 = sor.u32 %s223, %s224
      %p226 = scmp.eq.s32.totalorder %s225, 0
      %s228 = sadd.s32 %s227, 1
      %s229 = scalar_select %p226, %s227, %s228
      %p232 = pneg %p226
      %p233 = scmp.eq.s32.totalorder %s27, 1
      %p234 = por %p232, %p233
      %p235 = scmp.ne.s32.totalorder %s227, %s230
      %p236 = scmp.eq.s32.totalorder %s27, 0
      %p237 = por %p235, %p236
      %p238 = scmp.ne.s32.totalorder %s227, %s230
      %p239 = scmp.eq.s32.totalorder %s32, 1
      %p240 = por %p238, %p239
      %p241 = scmp.ne.s32.totalorder %s230, %s231
      %p242 = scmp.eq.s32.totalorder %s32, 0
      %p243 = por %p241, %p242
      %p244 = scmp.ne.s32.totalorder %s230, %s231
      %p245 = scmp.eq.s32.totalorder %s33, 1
      %p246 = por %p244, %p245
      %p248 = scmp.ne.s32.totalorder %s231, %s247
      %p249 = scmp.eq.s32.totalorder %s33, 0
      %p250 = por %p248, %p249
      %p251 = scmp.le.s32.totalorder 1, %s27
      %p252 = scmp.lt.s32.totalorder %s27, 3
      %p253 = pnand %p251, %p252
      %p254 = pneg %p253
      // Predicated region
      $region9: #{tpu_custom_call.1} parent=5 // pred_check
        _
      $region10: #{tpu_custom_call.1} parent=5 // pred_check_branch
        %256 = sbr.rel (%p253) target = $region12
      $region11: #{tpu_custom_call.1} parent=5 // pred_region
        %s257 = ssub.s32 %s27, 1
        // Predicated region
        $region13: #{tpu_custom_call.1} parent=11 // pred_check
          %p258 = pneg %p140
        $region14: #{tpu_custom_call.1} parent=11 // pred_check_branch
          %260 = sbr.rel (%p258) target = $region16
        $region15: #{tpu_custom_call.1} parent=11 // pred_region
          %262 = vsyncadd [#allocation9], 0
          %s263 = sshll.u32 %s3, 4
          %s264 = int_to_ptr.hbm [resolvable:$true] %s263
          %s265 = sshll.u32 [#allocation8], 4
          %s266 = int_to_ptr.vmem [resolvable:$true] %s265
          %271 = dma.hbm_to_vmem [thread:$0]  %s264, 512, %s266, [#allocation9], 128, 128, 8
        $region16: #{tpu_custom_call.1} parent=11 // pred_fallthru
          _
        // Predicated region
        $region17: #{tpu_custom_call.1} parent=11 // pred_check
          %p272 = pneg %p161
        $region18: #{tpu_custom_call.1} parent=11 // pred_check_branch
          %274 = sbr.rel (%p272) target = $region20
        $region19: #{tpu_custom_call.1} parent=11 // pred_region
          _
        $region20: #{tpu_custom_call.1} parent=11 // pred_fallthru
          _
      $region12: #{tpu_custom_call.1} parent=5 // pred_fallthru
        _
      %p275 = scmp.lt.s32.totalorder %s27, 2
      // Predicated region
      $region21: #{tpu_custom_call.1} parent=5 // pred_check
        %p276 = pneg %p275
      $region22: #{tpu_custom_call.1} parent=5 // pred_check_branch
        %278 = sbr.rel (%p276) target = $region24
      $region23: #{tpu_custom_call.1} parent=5 // pred_region
        // Predicated region
        $region25: #{tpu_custom_call.1} parent=23 // pred_check
          %p279 = pneg %p59
        $region26: #{tpu_custom_call.1} parent=23 // pred_check_branch
          %281 = sbr.rel (%p279) target = $region28
        $region27: #{tpu_custom_call.1} parent=23 // pred_region
          %s282 = sand.u32 %s49, 1
          %s283 = scalar_lea.sflag [#allocation3], %s282
          %s284 = sand.u32 %s49, 1
          %s285 = smul.addr %s284, 8
          %s286 = scalar_lea.vmem [#allocation2], %s285
          %288 = vsyncadd %s283, 0
          %s289 = smul.addr %s34, 8
          %s290 = scalar_lea.hbm %s0, %s289
          %s292 = sshll.u32 %s290, 4
          %s293 = int_to_ptr.hbm [resolvable:$true] %s292
          %s294 = sshll.u32 %s286, 4
          %s295 = int_to_ptr.vmem [resolvable:$true] %s294
          %297 = dma.hbm_to_vmem [thread:$0]  %s293, 128, %s295, %s283
        $region28: #{tpu_custom_call.1} parent=23 // pred_fallthru
          _
        // Predicated region
        $region29: #{tpu_custom_call.1} parent=23 // pred_check
          %p298 = pneg %p87
        $region30: #{tpu_custom_call.1} parent=23 // pred_check_branch
          %300 = sbr.rel (%p298) target = $region32
        $region31: #{tpu_custom_call.1} parent=23 // pred_region
          %s301 = sand.u32 %s27, 1
          %s302 = scalar_lea.sflag [#allocation6], %s301
          %s303 = sand.u32 %s77, 1
          %s304 = smul.addr %s303, 8
          %s305 = scalar_lea.vmem [#allocation5], %s304
          %307 = vsyncadd %s302, 0
          %s308 = sadd.s32 %s35, %s34
          %s309 = smul.addr %s308, 8
          %s310 = scalar_lea.hbm %s1, %s309
          %s312 = sshll.u32 %s310, 4
          %s313 = int_to_ptr.hbm [resolvable:$true] %s312
          %s314 = sshll.u32 %s305, 4
          %s315 = int_to_ptr.vmem [resolvable:$true] %s314
          %317 = dma.hbm_to_vmem [thread:$0]  %s313, 128, %s315, %s302
        $region32: #{tpu_custom_call.1} parent=23 // pred_fallthru
          _
        // Predicated region
        $region33: #{tpu_custom_call.1} parent=23 // pred_check
          %p318 = pneg %p113
        $region34: #{tpu_custom_call.1} parent=23 // pred_check_branch
          %320 = sbr.rel (%p318) target = $region36
        $region35: #{tpu_custom_call.1} parent=23 // pred_region
          %s321 = sand.u32 %s27, 1
          %s322 = scalar_lea.sflag [#allocation6], %s321
          %s323 = sand.u32 %s103, 1
          %s324 = smul.addr %s323, 8
          %s325 = scalar_lea.vmem [#allocation7], %s324
          %327 = vsyncadd %s322, 0
          %s328 = smul.addr %s34, 8
          %s329 = scalar_lea.hbm %s2, %s328
          %s331 = sshll.u32 %s329, 4
          %s332 = int_to_ptr.hbm [resolvable:$true] %s331
          %s333 = sshll.u32 %s325, 4
          %s334 = int_to_ptr.vmem [resolvable:$true] %s333
          %336 = dma.hbm_to_vmem [thread:$0]  %s332, 128, %s334, %s322
        $region36: #{tpu_custom_call.1} parent=23 // pred_fallthru
          _
        // Predicated region
        $region37: #{tpu_custom_call.1} parent=23 // pred_check
          %p337 = pneg %p181
        $region38: #{tpu_custom_call.1} parent=23 // pred_check_branch
          %339 = sbr.rel (%p337) target = $region40
        $region39: #{tpu_custom_call.1} parent=23 // pred_region
          %p340 = scmp.lt.s32.totalorder %s34, 1
          %s341 = scalar_select %p340, %s34, 1
          %s342 = scalar_lea.vmem %s5, %s341
        $region40: #{tpu_custom_call.1} parent=23 // pred_fallthru
          _
      $region24: #{tpu_custom_call.1} parent=5 // pred_fallthru
        _
      %p343 = scmp.le.s32.totalorder 1, %s27
      %p344 = scmp.lt.s32.totalorder %s27, 3
      %p345 = pnand %p343, %p344
      %p346 = pneg %p345
      // Predicated region
      $region41: #{tpu_custom_call.1} parent=5 // pred_check
        _
      $region42: #{tpu_custom_call.1} parent=5 // pred_check_branch
        %348 = sbr.rel (%p345) target = $region44
      $region43: #{tpu_custom_call.1} parent=5 // pred_region
        %s349 = ssub.s32 %s27, 1
        %s350 = sand.u32 %s52, 1
        %s351 = scalar_lea.sflag [#allocation3], %s350
        %s352 = sand.u32 %s52, 1
        %s353 = smul.addr %s352, 8
        %s354 = scalar_lea.vmem [#allocation2], %s353
        // Predicated region
        $region45: #{tpu_custom_call.1} parent=43 // pred_check
          %p355 = pneg %p65
        $region46: #{tpu_custom_call.1} parent=43 // pred_check_branch
          %357 = sbr.rel (%p355) target = $region48
        $region47: #{tpu_custom_call.1} parent=43 // pred_region
          %359 = dma.done %s351, 128
        $region48: #{tpu_custom_call.1} parent=43 // pred_fallthru
          _
        %s360 = sand.u32 %s32, 1
        %s361 = scalar_lea.sflag [#allocation6], %s360
        %s362 = sand.u32 %s80, 1
        %s363 = smul.addr %s362, 8
        %s364 = scalar_lea.vmem [#allocation5], %s363
        // Predicated region
        $region49: #{tpu_custom_call.1} parent=43 // pred_check
          %p365 = pneg %p93
        $region50: #{tpu_custom_call.1} parent=43 // pred_check_branch
          %367 = sbr.rel (%p365) target = $region52
        $region51: #{tpu_custom_call.1} parent=43 // pred_region
          %369 = dma.done %s361, 128
        $region52: #{tpu_custom_call.1} parent=43 // pred_fallthru
          _
        %s370 = sand.u32 %s32, 1
        %s371 = scalar_lea.sflag [#allocation6], %s370
        %s372 = sand.u32 %s106, 1
        %s373 = smul.addr %s372, 8
        %s374 = scalar_lea.vmem [#allocation7], %s373
        // Predicated region
        $region53: #{tpu_custom_call.1} parent=43 // pred_check
          %p375 = pneg %p119
        $region54: #{tpu_custom_call.1} parent=43 // pred_check_branch
          %377 = sbr.rel (%p375) target = $region56
        $region55: #{tpu_custom_call.1} parent=43 // pred_region
          %379 = dma.done %s371, 128
        $region56: #{tpu_custom_call.1} parent=43 // pred_fallthru
          _
        // Predicated region
        $region57: #{tpu_custom_call.1} parent=43 // pred_check
          %p380 = pneg %p140
        $region58: #{tpu_custom_call.1} parent=43 // pred_check_branch
          %382 = sbr.rel (%p380) target = $region60
        $region59: #{tpu_custom_call.1} parent=43 // pred_region
          %384 = dma.done [#allocation9], 512
        $region60: #{tpu_custom_call.1} parent=43 // pred_fallthru
          _
        %s385 = sand.u32 %s52, 1
        %s386 = scalar_lea.sflag [#allocation3], %s385
        %s387 = sand.u32 %s52, 1
        %s388 = smul.addr %s387, 8
        %s389 = scalar_lea.vmem [#allocation2], %s388
        %p390 = pneg %p65
        %p391 = pneg %p62
        %s392 = sand.u32 %s32, 1
        %s393 = scalar_lea.sflag [#allocation6], %s392
        %s394 = sand.u32 %s80, 1
        %s395 = smul.addr %s394, 8
        %s396 = scalar_lea.vmem [#allocation5], %s395
        %p397 = pneg %p93
        %p398 = pneg %p90
        %s399 = sand.u32 %s32, 1
        %s400 = scalar_lea.sflag [#allocation6], %s399
        %s401 = sand.u32 %s106, 1
        %s402 = smul.addr %s401, 8
        %s403 = scalar_lea.vmem [#allocation7], %s402
        %p404 = pneg %p119
        %p405 = pneg %p116
        %p406 = pneg %p140
        %p407 = pneg %p137
        %p408 = pneg %p161
        %p409 = pneg %p158
        %p410 = scmp.lt.s32.totalorder %s36, 1
        %s411 = scalar_select %p410, %s36, 1
        %s412 = scalar_lea.vmem %s5, %s411
        %p413 = pneg %p187
        %p414 = pneg %p184
        %p415 = pneg %p215
        %p416 = pneg %p212
        %s417 = sand.u32 %s202, 1
        %s418 = scalar_lea.sflag [#allocation4], %s417
        %s419 = sand.u32 %s202, 1
        %s420 = smul.addr %s419, 8
        %s421 = scalar_lea.vmem [#allocation10], %s420
        %p422 = pneg %p243
        %p423 = pneg %p240
        %s424 = sand.u32 %s230, 1
        %s425 = scalar_lea.sflag [#allocation12], %s424
        %s426 = sand.u32 %s230, 1
        %s427 = smul.addr %s426, 32
        %s428 = scalar_lea.vmem [#allocation11], %s427
        %p429 = scmp.lt.s32.totalorder %s36, 1
        %s430 = scalar_select %p429, %s36, 1
        %s431 = scalar_lea.vmem %s5, %s430
        %v432 = vld [vmem:[%s431] sm:$0x1]
        %v433 = vmul.f32 %v432, 1e+10
        %v435 = vperm.slane %v433, 0
        %v437 = vld [vmem:[%s354] sm:$0xff]
        %v438 = vld [vmem:[%s364] sm:$0xff]
        %v439 = vld [vmem:[%s374] sm:$0xff]
        %vm440 = vcmask 64512
        %v442 = vsel %vm440, %v438, 0
        %v445 = vsel %vm440, %v437, 0
        %447 = vmatpush.xpose.msra.mxu0 0.0
        %448 = vmatpush.xpose.msra.mxu0 0.0
        %449 = vmatpush.xpose.msra.mxu0 0.0
        %450 = vmatpush.xpose.msra.mxu0 0.0
        %451 = vmatpush.xpose.msra.mxu0 0.0
        %452 = vmatpush.xpose.msra.mxu0 0.0
        %453 = vmatpush.xpose.msra.mxu0 0.0
        %454 = vmatpush.xpose.msra.mxu0 0.0
        %455 = vmatpush.xpose.msra.mxu0 0.0
        %456 = vmatpush.xpose.msra.mxu0 0.0
        %457 = vmatpush.xpose.msra.mxu0 0.0
        %458 = vmatpush.xpose.msra.mxu0 0.0
        %459 = vmatpush.xpose.msra.mxu0 0.0
        %460 = vmatpush.xpose.msra.mxu0 0.0
        %461 = vmatpush.xpose.msra.mxu0 0.0
        %462 = vmatpush.xpose.msra.mxu0 %v445
        %463 = vmatmul.f32.gmra.mxu0 %v442
        %v464 = vpop.f32.mrf.mxu0
        %v465 = vadd.f32 0.0, %v464
        %466 = vdwg.mxu0
        %v467 = vmul.f32 %v465, 0.35355338
        %v468 = vsub.f32 %v467, %v435
        %469 = vst.msk [vmem:[%s428] sm:$0xff] %vm440, %v468
        %v470 = vsel %vm440, %v468, -inf
        %471 = vmax.xlane.f32.xlu0 %v470
        %v472 = vpop.xlane.xlu0 %471
        %v473 = vsub.f32 %v468, %v472
        %v474 = vmul.f32 %v473, 1.442695
        %v475 = vpow.pop %v474
        %v476 = vsel %vm440, %v475, 0.0
        %477 = vadd.xlane.f32.xlu0 %v476
        %v478 = vpop.xlane.xlu0 %477
        %v479 = vrcp.pop %v478
        %v480 = vmul.f32 %v478, %v479
        %v481 = vsub.f32 1.0, %v480
        %v482 = vmul.f32 %v479, %v481
        %v483 = vadd.f32 %v479, %v482
        %vm484 = vweird.f32 %v478
        %vm485 = vweird.f32 %v479
        %vm486 = vmor %vm484, %vm485
        %v487 = vsel %vm486, %v479, %v483
        %v488 = vand.u32 2147483647, %v478
        %vm489 = vcmp.eq.f32.partialorder %v488, 8.507059e+37
        %v490 = vand.u32 %v478, 2147483648
        %v491 = vor.u32 1.1754944e-38, %v490
        %v492 = vsel %vm489, %v491, %v487
        %v493 = vmul.f32 %v475, %v492
        %v495 = vsel %vm440, %v493, 0
        %497 = vmatpush.msra.mxu0 0.0
        %498 = vmatpush.msra.mxu0 0.0
        %499 = vmatpush.msra.mxu0 0.0
        %500 = vmatpush.msra.mxu0 0.0
        %501 = vmatpush.msra.mxu0 0.0
        %502 = vmatpush.msra.mxu0 0.0
        %503 = vmatpush.msra.mxu0 0.0
        %504 = vmatpush.msra.mxu0 0.0
        %505 = vmatpush.msra.mxu0 0.0
        %506 = vmatpush.msra.mxu0 0.0
        %507 = vmatpush.msra.mxu0 0.0
        %508 = vmatpush.msra.mxu0 0.0
        %509 = vmatpush.msra.mxu0 0.0
        %510 = vmatpush.msra.mxu0 0.0
        %511 = vmatpush.msra.mxu0 0.0
        %512 = vmatpush.msra.mxu0 %v439
        %513 = vmatmul.f32.gmra.mxu0 %v495
        %v514 = vpop.f32.mrf.mxu0
        %v515 = vadd.f32 0.0, %v514
        %516 = vdwg.mxu0
        %v517 = vld [vmem:[%s354] sm:$0xff]
        %v518 = vld [vmem:[%s364] sm:$0xff]
        %v519 = vld [vmem:[%s374] sm:$0xff]
        %521 = vrot.lane.b32.xlu0 %v518, 120
        %v522 = vpop.permute.xlu0 %521
        %524 = vrot.lane.b32.xlu0 %v517, 120
        %v525 = vpop.permute.xlu0 %524
        %v526 = vsel %vm440, %v522, 0
        %v528 = vsel %vm440, %v525, 0
        %530 = vmatpush.xpose.msra.mxu0 0.0
        %531 = vmatpush.xpose.msra.mxu0 0.0
        %532 = vmatpush.xpose.msra.mxu0 0.0
        %533 = vmatpush.xpose.msra.mxu0 0.0
        %534 = vmatpush.xpose.msra.mxu0 0.0
        %535 = vmatpush.xpose.msra.mxu0 0.0
        %536 = vmatpush.xpose.msra.mxu0 0.0
        %537 = vmatpush.xpose.msra.mxu0 0.0
        %538 = vmatpush.xpose.msra.mxu0 0.0
        %539 = vmatpush.xpose.msra.mxu0 0.0
        %540 = vmatpush.xpose.msra.mxu0 0.0
        %541 = vmatpush.xpose.msra.mxu0 0.0
        %542 = vmatpush.xpose.msra.mxu0 0.0
        %543 = vmatpush.xpose.msra.mxu0 0.0
        %544 = vmatpush.xpose.msra.mxu0 0.0
        %545 = vmatpush.xpose.msra.mxu0 %v528
        %546 = vmatmul.f32.gmra.mxu0 %v526
        %v547 = vpop.f32.mrf.mxu0
        %v548 = vadd.f32 0.0, %v547
        %549 = vdwg.mxu0
        %v550 = vmul.f32 %v548, 0.35355338
        %v551 = vsub.f32 %v550, %v435
        %s552 = scalar_lea.vmem %s428, 8 [#allocation11]
        %553 = vst.msk [vmem:[%s552] sm:$0xff] %vm440, %v551
        %v554 = vsel %vm440, %v551, -inf
        %555 = vmax.xlane.f32.xlu0 %v554
        %v556 = vpop.xlane.xlu0 %555
        %v557 = vsub.f32 %v551, %v556
        %v558 = vmul.f32 %v557, 1.442695
        %v559 = vpow.pop %v558
        %v560 = vsel %vm440, %v559, 0.0
        %561 = vadd.xlane.f32.xlu0 %v560
        %v562 = vpop.xlane.xlu0 %561
        %v563 = vrcp.pop %v562
        %v564 = vmul.f32 %v562, %v563
        %v565 = vsub.f32 1.0, %v564
        %v566 = vmul.f32 %v563, %v565
        %v567 = vadd.f32 %v563, %v566
        %vm568 = vweird.f32 %v562
        %vm569 = vweird.f32 %v563
        %vm570 = vmor %vm568, %vm569
        %v571 = vsel %vm570, %v563, %v567
        %v572 = vand.u32 2147483647, %v562
        %vm573 = vcmp.eq.f32.partialorder %v572, 8.507059e+37
        %v574 = vand.u32 %v562, 2147483648
        %v575 = vor.u32 1.1754944e-38, %v574
        %v576 = vsel %vm573, %v575, %v571
        %v577 = vmul.f32 %v559, %v576
        %579 = vrot.lane.b32.xlu0 %v519, 120
        %v580 = vpop.permute.xlu0 %579
        %v583 = vsel %vm440, %v577, 0
        %585 = vmatpush.msra.mxu0 0.0
        %586 = vmatpush.msra.mxu0 0.0
        %587 = vmatpush.msra.mxu0 0.0
        %588 = vmatpush.msra.mxu0 0.0
        %589 = vmatpush.msra.mxu0 0.0
        %590 = vmatpush.msra.mxu0 0.0
        %591 = vmatpush.msra.mxu0 0.0
        %592 = vmatpush.msra.mxu0 0.0
        %593 = vmatpush.msra.mxu0 0.0
        %594 = vmatpush.msra.mxu0 0.0
        %595 = vmatpush.msra.mxu0 0.0
        %596 = vmatpush.msra.mxu0 0.0
        %597 = vmatpush.msra.mxu0 0.0
        %598 = vmatpush.msra.mxu0 0.0
        %599 = vmatpush.msra.mxu0 0.0
        %600 = vmatpush.msra.mxu0 %v580
        %601 = vmatmul.f32.gmra.mxu0 %v583
        %v602 = vpop.f32.mrf.mxu0
        %v603 = vadd.f32 0.0, %v602
        %604 = vdwg.mxu0
        %v605 = vld [vmem:[%s354] sm:$0xff]
        %v606 = vld [vmem:[%s364] sm:$0xff]
        %v607 = vld [vmem:[%s374] sm:$0xff]
        %609 = vrot.lane.b32.xlu0 %v606, 112
        %v610 = vpop.permute.xlu0 %609
        %612 = vrot.lane.b32.xlu0 %v605, 112
        %v613 = vpop.permute.xlu0 %612
        %v614 = vsel %vm440, %v610, 0
        %v616 = vsel %vm440, %v613, 0
        %618 = vmatpush.xpose.msra.mxu0 0.0
        %619 = vmatpush.xpose.msra.mxu0 0.0
        %620 = vmatpush.xpose.msra.mxu0 0.0
        %621 = vmatpush.xpose.msra.mxu0 0.0
        %622 = vmatpush.xpose.msra.mxu0 0.0
        %623 = vmatpush.xpose.msra.mxu0 0.0
        %624 = vmatpush.xpose.msra.mxu0 0.0
        %625 = vmatpush.xpose.msra.mxu0 0.0
        %626 = vmatpush.xpose.msra.mxu0 0.0
        %627 = vmatpush.xpose.msra.mxu0 0.0
        %628 = vmatpush.xpose.msra.mxu0 0.0
        %629 = vmatpush.xpose.msra.mxu0 0.0
        %630 = vmatpush.xpose.msra.mxu0 0.0
        %631 = vmatpush.xpose.msra.mxu0 0.0
        %632 = vmatpush.xpose.msra.mxu0 0.0
        %633 = vmatpush.xpose.msra.mxu0 %v616
        %634 = vmatmul.f32.gmra.mxu0 %v614
        %v635 = vpop.f32.mrf.mxu0
        %v636 = vadd.f32 0.0, %v635
        %637 = vdwg.mxu0
        %v638 = vmul.f32 %v636, 0.35355338
        %v639 = vsub.f32 %v638, %v435
        %s640 = scalar_lea.vmem %s428, 16 [#allocation11]
        %641 = vst.msk [vmem:[%s640] sm:$0xff] %vm440, %v639
        %v642 = vsel %vm440, %v639, -inf
        %643 = vmax.xlane.f32.xlu0 %v642
        %v644 = vpop.xlane.xlu0 %643
        %v645 = vsub.f32 %v639, %v644
        %v646 = vmul.f32 %v645, 1.442695
        %v647 = vpow.pop %v646
        %v648 = vsel %vm440, %v647, 0.0
        %649 = vadd.xlane.f32.xlu0 %v648
        %v650 = vpop.xlane.xlu0 %649
        %v651 = vrcp.pop %v650
        %v652 = vmul.f32 %v650, %v651
        %v653 = vsub.f32 1.0, %v652
        %v654 = vmul.f32 %v651, %v653
        %v655 = vadd.f32 %v651, %v654
        %vm656 = vweird.f32 %v650
        %vm657 = vweird.f32 %v651
        %vm658 = vmor %vm656, %vm657
        %v659 = vsel %vm658, %v651, %v655
        %v660 = vand.u32 2147483647, %v650
        %vm661 = vcmp.eq.f32.partialorder %v660, 8.507059e+37
        %v662 = vand.u32 %v650, 2147483648
        %v663 = vor.u32 1.1754944e-38, %v662
        %v664 = vsel %vm661, %v663, %v659
        %v665 = vmul.f32 %v647, %v664
        %667 = vrot.lane.b32.xlu0 %v607, 112
        %v668 = vpop.permute.xlu0 %667
        %v671 = vsel %vm440, %v665, 0
        %673 = vmatpush.msra.mxu0 0.0
        %674 = vmatpush.msra.mxu0 0.0
        %675 = vmatpush.msra.mxu0 0.0
        %676 = vmatpush.msra.mxu0 0.0
        %677 = vmatpush.msra.mxu0 0.0
        %678 = vmatpush.msra.mxu0 0.0
        %679 = vmatpush.msra.mxu0 0.0
        %680 = vmatpush.msra.mxu0 0.0
        %681 = vmatpush.msra.mxu0 0.0
        %682 = vmatpush.msra.mxu0 0.0
        %683 = vmatpush.msra.mxu0 0.0
        %684 = vmatpush.msra.mxu0 0.0
        %685 = vmatpush.msra.mxu0 0.0
        %686 = vmatpush.msra.mxu0 0.0
        %687 = vmatpush.msra.mxu0 0.0
        %688 = vmatpush.msra.mxu0 %v668
        %689 = vmatmul.f32.gmra.mxu0 %v671
        %v690 = vpop.f32.mrf.mxu0
        %v691 = vadd.f32 0.0, %v690
        %692 = vdwg.mxu0
        %v693 = vld [vmem:[%s354] sm:$0xff]
        %v694 = vld [vmem:[%s364] sm:$0xff]
        %v695 = vld [vmem:[%s374] sm:$0xff]
        %697 = vrot.lane.b32.xlu0 %v694, 104
        %v698 = vpop.permute.xlu0 %697
        %700 = vrot.lane.b32.xlu0 %v693, 104
        %v701 = vpop.permute.xlu0 %700
        %v702 = vsel %vm440, %v698, 0
        %v704 = vsel %vm440, %v701, 0
        %706 = vmatpush.xpose.msra.mxu0 0.0
        %707 = vmatpush.xpose.msra.mxu0 0.0
        %708 = vmatpush.xpose.msra.mxu0 0.0
        %709 = vmatpush.xpose.msra.mxu0 0.0
        %710 = vmatpush.xpose.msra.mxu0 0.0
        %711 = vmatpush.xpose.msra.mxu0 0.0
        %712 = vmatpush.xpose.msra.mxu0 0.0
        %713 = vmatpush.xpose.msra.mxu0 0.0
        %714 = vmatpush.xpose.msra.mxu0 0.0
        %715 = vmatpush.xpose.msra.mxu0 0.0
        %716 = vmatpush.xpose.msra.mxu0 0.0
        %717 = vmatpush.xpose.msra.mxu0 0.0
        %718 = vmatpush.xpose.msra.mxu0 0.0
        %719 = vmatpush.xpose.msra.mxu0 0.0
        %720 = vmatpush.xpose.msra.mxu0 0.0
        %721 = vmatpush.xpose.msra.mxu0 %v704
        %722 = vmatmul.f32.gmra.mxu0 %v702
        %v723 = vpop.f32.mrf.mxu0
        %v724 = vadd.f32 0.0, %v723
        %725 = vdwg.mxu0
        %v726 = vmul.f32 %v724, 0.35355338
        %v727 = vsub.f32 %v726, %v435
        %s728 = scalar_lea.vmem %s428, 24 [#allocation11]
        %729 = vst.msk [vmem:[%s728] sm:$0xff] %vm440, %v727
        %v730 = vsel %vm440, %v727, -inf
        %731 = vmax.xlane.f32.xlu0 %v730
        %v732 = vpop.xlane.xlu0 %731
        %v733 = vsub.f32 %v727, %v732
        %v734 = vmul.f32 %v733, 1.442695
        %v735 = vpow.pop %v734
        %v736 = vsel %vm440, %v735, 0.0
        %737 = vadd.xlane.f32.xlu0 %v736
        %v738 = vpop.xlane.xlu0 %737
        %v739 = vrcp.pop %v738
        %v740 = vmul.f32 %v738, %v739
        %v741 = vsub.f32 1.0, %v740
        %v742 = vmul.f32 %v739, %v741
        %v743 = vadd.f32 %v739, %v742
        %vm744 = vweird.f32 %v738
        %vm745 = vweird.f32 %v739
        %vm746 = vmor %vm744, %vm745
        %v747 = vsel %vm746, %v739, %v743
        %v748 = vand.u32 2147483647, %v738
        %vm749 = vcmp.eq.f32.partialorder %v748, 8.507059e+37
        %v750 = vand.u32 %v738, 2147483648
        %v751 = vor.u32 1.1754944e-38, %v750
        %v752 = vsel %vm749, %v751, %v747
        %v753 = vmul.f32 %v735, %v752
        %755 = vrot.lane.b32.xlu0 %v695, 104
        %v756 = vpop.permute.xlu0 %755
        %v759 = vsel %vm440, %v753, 0
        %761 = vmatpush.msra.mxu0 0.0
        %762 = vmatpush.msra.mxu0 0.0
        %763 = vmatpush.msra.mxu0 0.0
        %764 = vmatpush.msra.mxu0 0.0
        %765 = vmatpush.msra.mxu0 0.0
        %766 = vmatpush.msra.mxu0 0.0
        %767 = vmatpush.msra.mxu0 0.0
        %768 = vmatpush.msra.mxu0 0.0
        %769 = vmatpush.msra.mxu0 0.0
        %770 = vmatpush.msra.mxu0 0.0
        %771 = vmatpush.msra.mxu0 0.0
        %772 = vmatpush.msra.mxu0 0.0
        %773 = vmatpush.msra.mxu0 0.0
        %774 = vmatpush.msra.mxu0 0.0
        %775 = vmatpush.msra.mxu0 0.0
        %776 = vmatpush.msra.mxu0 %v756
        %777 = vmatmul.f32.gmra.mxu0 %v759
        %v778 = vpop.f32.mrf.mxu0
        %v779 = vadd.f32 0.0, %v778
        %780 = vdwg.mxu0
        %782 = vrot.lane.b32.xlu0 %v603, 8
        %v783 = vpop.permute.xlu0 %782
        %786 = vrot.lane.b32.xlu0 %v691, 16
        %v787 = vpop.permute.xlu0 %786
        %790 = vrot.lane.b32.xlu0 %v779, 24
        %v791 = vpop.permute.xlu0 %790
        %v793 = vsel %vm440, %v515, %v783
        %vm794 = vcmask 130048
        %v795 = vsel %vm794, %v793, %v787
        %vm796 = vcmask 195584
        %v797 = vsel %vm796, %v795, %v791
        %v798 = vld [vmem:[#allocation8] sm:$0xff]
        %v799 = vld [vmem:[#allocation8 + $0x8] sm:$0xff]
        %v800 = vld [vmem:[#allocation8 + $0x10] sm:$0xff]
        %v801 = vld [vmem:[#allocation8 + $0x18] sm:$0xff]
        %v802 = vld [vmem:[%s4] sm:$0x1]
        %v804 = vperm.slane %v802, 0
        %vm806 = vcmask 261120
        %v808 = vsel %vm806, %v797, 0
        %810 = vmatpush.msra.mxu0 0.0
        %811 = vmatpush.msra.mxu0 0.0
        %812 = vmatpush.msra.mxu0 0.0
        %813 = vmatpush.msra.mxu0 0.0
        %814 = vmatpush.msra.mxu0 0.0
        %815 = vmatpush.msra.mxu0 0.0
        %816 = vmatpush.msra.mxu0 0.0
        %817 = vmatpush.msra.mxu0 0.0
        %818 = vmatpush.msra.mxu0 0.0
        %819 = vmatpush.msra.mxu0 0.0
        %820 = vmatpush.msra.mxu0 0.0
        %821 = vmatpush.msra.mxu0 0.0
        %822 = vmatpush.msra.mxu0 %v801
        %823 = vmatpush.msra.mxu0 %v800
        %824 = vmatpush.msra.mxu0 %v799
        %825 = vmatpush.msra.mxu0 %v798
        %826 = vmatmul.f32.gmra.mxu0 %v808
        %v827 = vpop.f32.mrf.mxu0
        %v828 = vadd.f32 %v804, %v827
        %829 = vdwg.mxu0
        %830 = vst.msk [vmem:[%s421] sm:$0xff] %vm806, %v828
        %s831 = sand.u32 %s202, 1
        %s832 = scalar_lea.sflag [#allocation4], %s831
        %s833 = sand.u32 %s202, 1
        %s834 = smul.addr %s833, 8
        %s835 = scalar_lea.vmem [#allocation10], %s834
        %s836 = sand.u32 %s230, 1
        %s837 = scalar_lea.sflag [#allocation12], %s836
        %s838 = sand.u32 %s230, 1
        %s839 = smul.addr %s838, 32
        %s840 = scalar_lea.vmem [#allocation11], %s839
        // Predicated region
        $region61: #{tpu_custom_call.1} parent=43 // pred_check
          %p841 = pneg %p212
        $region62: #{tpu_custom_call.1} parent=43 // pred_check_branch
          %843 = sbr.rel (%p841) target = $region64
        $region63: #{tpu_custom_call.1} parent=43 // pred_region
          %845 = vsyncadd %s832, 0
          %s846 = sadd.s32 %s37, %s36
          %s847 = smul.addr %s846, 8
          %s848 = scalar_lea.hbm %s6, %s847
          %s850 = sshll.u32 %s835, 4
          %s851 = int_to_ptr.vmem [resolvable:$true] %s850
          %s852 = sshll.u32 %s848, 4
          %s853 = int_to_ptr.hbm [resolvable:$true] %s852
          %855 = dma.vmem_to_hbm [thread:$0]  %s851, 128, %s853, %s832
        $region64: #{tpu_custom_call.1} parent=43 // pred_fallthru
          _
        // Predicated region
        $region65: #{tpu_custom_call.1} parent=43 // pred_check
          %p856 = pneg %p240
        $region66: #{tpu_custom_call.1} parent=43 // pred_check_branch
          %858 = sbr.rel (%p856) target = $region68
        $region67: #{tpu_custom_call.1} parent=43 // pred_region
          %860 = vsyncadd %s837, 0
          %s861 = smul.addr %s36, 4
          %s862 = sadd.s32 %s37, %s861
          %s863 = smul.addr %s862, 8
          %s864 = scalar_lea.hbm %s7, %s863
          %s865 = sshll.u32 %s840, 4
          %s866 = int_to_ptr.vmem [resolvable:$true] %s865
          %s867 = sshll.u32 %s864, 4
          %s868 = int_to_ptr.hbm [resolvable:$true] %s867
          %873 = dma.vmem_to_hbm [thread:$0]  %s866, 512, %s868, %s837, 128, 128, 8
        $region68: #{tpu_custom_call.1} parent=43 // pred_fallthru
          _
      $region44: #{tpu_custom_call.1} parent=5 // pred_fallthru
        _
      %p874 = scmp.le.s32.totalorder 2, %s27
      // Predicated region
      $region69: #{tpu_custom_call.1} parent=5 // pred_check
        %p875 = pneg %p874
      $region70: #{tpu_custom_call.1} parent=5 // pred_check_branch
        %877 = sbr.rel (%p875) target = $region72
      $region71: #{tpu_custom_call.1} parent=5 // pred_region
        %s878 = ssub.s32 %s27, 2
        // Predicated region
        $region73: #{tpu_custom_call.1} parent=71 // pred_check
          %p879 = pneg %p218
        $region74: #{tpu_custom_call.1} parent=71 // pred_check_branch
          %881 = sbr.rel (%p879) target = $region76
        $region75: #{tpu_custom_call.1} parent=71 // pred_region
          %s882 = sand.u32 %s203, 1
          %s883 = scalar_lea.sflag [#allocation4], %s882
          %s884 = sand.u32 %s203, 1
          %s885 = smul.addr %s884, 8
          %s886 = scalar_lea.vmem [#allocation10], %s885
          %888 = dma.done %s883, 128
        $region76: #{tpu_custom_call.1} parent=71 // pred_fallthru
          _
        // Predicated region
        $region77: #{tpu_custom_call.1} parent=71 // pred_check
          %p889 = pneg %p246
        $region78: #{tpu_custom_call.1} parent=71 // pred_check_branch
          %891 = sbr.rel (%p889) target = $region80
        $region79: #{tpu_custom_call.1} parent=71 // pred_region
          %s892 = sand.u32 %s231, 1
          %s893 = scalar_lea.sflag [#allocation12], %s892
          %s894 = sand.u32 %s231, 1
          %s895 = smul.addr %s894, 32
          %s896 = scalar_lea.vmem [#allocation11], %s895
          %898 = dma.done %s893, 512
        $region80: #{tpu_custom_call.1} parent=71 // pred_fallthru
          _
      $region72: #{tpu_custom_call.1} parent=5 // pred_fallthru
        _
    $region6: #{tpu_custom_call.1} parent=1 // loop_footer
      %s31 = sadd.s32 1, %s27
    $region7: #{tpu_custom_call.1} parent=1 // loop_footer_branch
      %26 = sbr.rel target = $region3
    $region8: #{tpu_custom_call.1} parent=1 // loop_exit
      _
    %899 = vsyncpa [#allocation3], 1
    %s900 = scalar_lea.sflag [#allocation3], 1
    %901 = vsyncpa %s900, 1
    %902 = vsyncpa [#allocation6], 1
    %s903 = scalar_lea.sflag [#allocation6], 1
    %904 = vsyncpa %s903, 1
    %905 = vsyncpa [#allocation9], 1
    %906 = vsyncpa [#allocation4], 1
    %s907 = scalar_lea.sflag [#allocation4], 1
    %908 = vsyncpa %s907, 1
    %909 = vsyncpa [#allocation12], 1
    %s910 = scalar_lea.sflag [#allocation12], 1
    %911 = vsyncpa %s910, 1

</llo_original>
